<compile_context>
chip_gen: v5e
topology: v5e:2x2
jax: 0.10.0
libtpu: 0.0.40
codegen_flags: <defaults>
</compile_context>

<pallas_src>
from typing import NamedTuple

import numpy as np
import jax
import jax.numpy as jnp
from jax.experimental import pallas as pl
from jax.experimental.pallas import tpu as pltpu

LANE = 128     # lane (last-dim) tile width
SUBLANE = 8    # sublane (second-to-last dim) tile width


def _round_up(n, m):
    return ((n + m - 1) // m) * m


def _pad2(a, rows, cols, dtype=None):
    """Zero-pad a 2-D array to (rows, cols) and optionally cast (one pass)."""
    out = jnp.pad(a, ((0, rows - a.shape[0]), (0, cols - a.shape[1])))
    if dtype is not None and out.dtype != dtype:
        out = out.astype(dtype)
    return out


class PreparedParams(NamedTuple):
    w1: jax.Array
    b1: jax.Array
    w2: jax.Array
    b2: jax.Array
    w3: jax.Array
    b3: jax.Array
    input_size: int
    num_classes: int


def prepare_params(w1, b1, w2, b2, w3, b3):
    """One-time pad-to-lane-width + bf16 cast of the parameters.

    Hoisted out of the per-call forward path so each forward only streams x.
    wi: (in_features, out_features) float32, bi: (1, out_features) float32.
    """
    input_size, hidden = w1.shape
    num_classes = w3.shape[1]
    in_p = _round_up(input_size, LANE)
    hid_p = _round_up(hidden, LANE)
    out_p = _round_up(num_classes, LANE)
    return PreparedParams(
        w1=_pad2(w1, in_p, hid_p, jnp.bfloat16),
        b1=_pad2(b1, 1, hid_p, jnp.float32),
        w2=_pad2(w2, hid_p, hid_p, jnp.bfloat16),
        b2=_pad2(b2, 1, hid_p, jnp.float32),
        w3=_pad2(w3, hid_p, out_p, jnp.bfloat16),
        b3=_pad2(b3, 1, out_p, jnp.float32),
        input_size=input_size,
        num_classes=num_classes,
    )


def mlp_kernel(x_ref, w1_ref, b1_ref, w2_ref, b2_ref, w3_ref, b3_ref, o_ref):
    # x arrives as f32 (aligned fast path) or already-bf16 (padded path); the
    # cast is a VPU op hidden under MXU slack either way.
    x = x_ref[...].astype(jnp.bfloat16)
    # Layer 1: MXU matmul (bf16 inputs, f32 accumulate) + bias + ReLU
    h = jnp.dot(x, w1_ref[...], preferred_element_type=jnp.float32)
    h = jnp.maximum(h + b1_ref[...], 0.0)
    # Layer 2
    h = jnp.dot(h.astype(jnp.bfloat16), w2_ref[...],
                preferred_element_type=jnp.float32)
    h = jnp.maximum(h + b2_ref[...], 0.0)
    # Layer 3 (logits, no activation)
    out = jnp.dot(h.astype(jnp.bfloat16), w3_ref[...],
                  preferred_element_type=jnp.float32)
    o_ref[...] = (out + b3_ref[...]).astype(o_ref.dtype)


def _pick_batch_tile(batch, batch_tile):
    """Batch-tile selection: multiple of 8 (sublane); prefer >= 2 grid steps
    when the batch allows it so the 'parallel' axis can shard across the two
    v7x TensorCores (no effect on single-TC v5e/v6e)."""
    b_sub = _round_up(batch, SUBLANE)
    if b_sub <= batch_tile:
        if b_sub >= 2 * SUBLANE:
            return _round_up(b_sub // 2, SUBLANE)   # >= 2 tiles
        return b_sub                                # tiny batch: one grid step
    return batch_tile


def neural_net_forward(x, params: PreparedParams, *, batch_tile=512,
                       out_dtype=jnp.float32):
    """Fused 3-layer MLP forward as a single pallas_call.

    x: (B, input_size) float32 (or bfloat16); params from prepare_params().
    Returns (B, num_classes) in out_dtype (pass jnp.bfloat16 to halve output
    writeback if the consumer tolerates it).

    batch_tile: rows per grid step.  512 is a good v5e/v6e default; keep it at
    256-512 on v7x (half the VMEM per TC).  Weights stay fully VMEM-resident.
    NOTE(v7x): if hidden is scaled until w2 alone reaches ~8-12 MiB of bf16,
    add a K-tiling grid axis marked "arbitrary" with an f32 VMEM accumulator
    instead of keeping w2 whole.
    """
    B, in_size = x.shape
    assert in_size == params.input_size
    in_p, hid_p = params.w1.shape
    out_p = params.w3.shape[1]
    num_classes = params.num_classes

    bt = _pick_batch_tile(B, batch_tile)
    B_p = _round_up(B, bt)

    if B_p == B and in_p == in_size:
        # Already aligned: stream x as-is (cast happens inside the kernel),
        # avoiding a separate read+write pass over the largest streamed tensor.
        x_p = x
    else:
        # Padding unavoidable: fuse the bf16 cast into the same padding pass.
        # Padded batch rows are zeros -> rows B..B_p-1 hold relu(b)-derived
        # garbage that is sliced off below; never reuse those rows.
        x_p = _pad2(x, B_p, in_p, jnp.bfloat16)

    grid = (B_p // bt,)

    # Constant-index operands (weights/biases) never change block index, so
    # double buffering only wastes VMEM -> single-buffer them.
    resident = dict(pipeline_mode=pl.Buffered(1))
    in_specs = [
        pl.BlockSpec((bt, in_p),     lambda i: (i, 0)),               # x (streamed)
        pl.BlockSpec((in_p, hid_p),  lambda i: (0, 0), **resident),   # w1
        pl.BlockSpec((1, hid_p),     lambda i: (0, 0), **resident),   # b1
        pl.BlockSpec((hid_p, hid_p), lambda i: (0, 0), **resident),   # w2
        pl.BlockSpec((1, hid_p),     lambda i: (0, 0), **resident),   # b2
        pl.BlockSpec((hid_p, out_p), lambda i: (0, 0), **resident),   # w3
        pl.BlockSpec((1, out_p),     lambda i: (0, 0), **resident),   # b3
    ]
    out_specs = pl.BlockSpec((bt, out_p), lambda i: (i, 0))  # lane-dense store

    # Scoped-VMEM limit sized from the actual buffers (v5e default is only
    # 16 MiB); headroom for f32 intermediates/spills; capped for v7x.
    x_bytes = 2 if x_p.dtype == jnp.bfloat16 else 4
    out_bytes = np.dtype(out_dtype).itemsize
    buf_bytes = (
        2 * bt * in_p * x_bytes                                   # x, double-buffered
        + 2 * bt * out_p * out_bytes                              # out, double-buffered
        + (in_p * hid_p + hid_p * hid_p + hid_p * out_p) * 2     # weights bf16, single
        + (2 * hid_p + out_p) * 4                                 # biases f32, single
        + 4 * bt * hid_p * 4                                      # f32 intermediates
    )
    vmem_limit = int(min(64 << 20, max(32 << 20, buf_bytes * 2)))

    out_padded = pl.pallas_call(
        mlp_kernel,
        out_shape=jax.ShapeDtypeStruct((B_p, out_p), out_dtype),
        grid_spec=pltpu.PrefetchScalarGridSpec(
            num_scalar_prefetch=0,
            grid=grid,
            in_specs=in_specs,
            out_specs=out_specs,
        ),
        compiler_params=pltpu.CompilerParams(
            dimension_semantics=("parallel",),   # batch tiles shard across TCs (v7x)
            vmem_limit_bytes=vmem_limit,
        ),
    )(x_p, params.w1, params.b1, params.w2, params.b2, params.w3, params.b3)

    # Slice padded batch rows / class columns off (fuses with callers under jit).
    return out_padded[:B, :num_classes]


def init_params(key, input_size, hidden_size, num_classes):
    """Deterministic synthetic init (uniform, PyTorch-Linear-like fan-in scale)."""
    ks = jax.random.split(key, 6)

    def lin(kw, kb, fan_in, fan_out):
        bound = 1.0 / jnp.sqrt(fan_in)
        # stored as (in, out) so the kernel does x @ W directly
        w = jax.random.uniform(kw, (fan_in, fan_out), jnp.float32, -bound, bound)
        b = jax.random.uniform(kb, (1, fan_out), jnp.float32, -bound, bound)
        return w, b

    w1, b1 = lin(ks[0], ks[1], input_size, hidden_size)
    w2, b2 = lin(ks[2], ks[3], hidden_size, hidden_size)
    w3, b3 = lin(ks[4], ks[5], hidden_size, num_classes)
    return w1, b1, w2, b2, w3, b3


def reference_forward_f32(x, w1, b1, w2, b2, w3, b3):
    """Pure f32 reference (matches the PyTorch module numerics)."""
    h = jnp.maximum(x @ w1 + b1, 0.0)
    h = jnp.maximum(h @ w2 + b2, 0.0)
    return h @ w3 + b3


def reference_forward_bf16(x, w1, b1, w2, b2, w3, b3):
    """Reference with the same bf16-input / f32-accumulate numerics as the kernel."""
    bf = jnp.bfloat16
    h = jnp.dot(x.astype(bf), w1.astype(bf), preferred_element_type=jnp.float32) + b1
    h = jnp.maximum(h, 0.0)
    h = jnp.dot(h.astype(bf), w2.astype(bf), preferred_element_type=jnp.float32) + b2
    h = jnp.maximum(h, 0.0)
    return jnp.dot(h.astype(bf), w3.astype(bf), preferred_element_type=jnp.float32) + b3


if __name__ == "__main__":
    batch = 12            # exercises batch padding (12 -> 16) and a 2-tile grid
    input_size = 20       # exercises lane padding (20 -> 128)
    hidden_size = 32
    num_classes = 10      # exercises output-column padding (10 -> 128)

    key = jax.random.PRNGKey(0)
    kx, kp = jax.random.split(key)
    x = jax.random.normal(kx, (batch, input_size), dtype=jnp.float32)
    raw_params = init_params(kp, input_size, hidden_size, num_classes)

    prep = prepare_params(*raw_params)                 # one-time pad + bf16 cast
    fwd = jax.jit(lambda xx: neural_net_forward(xx, prep))

    out = jax.block_until_ready(fwd(x))

    assert out.shape == (batch, num_classes)
    # Plumbing/padding check vs a reference using identical bf16/f32 numerics.
    ref_bf16 = reference_forward_bf16(x, *raw_params)
    assert jnp.allclose(out, ref_bf16, atol=1e-3, rtol=1e-3), "mismatch vs bf16 ref"
    # Fidelity check vs the pure-f32 PyTorch-equivalent forward (looser tol:
    # the kernel feeds bf16 into the MXU, accumulating in f32).
    ref_f32 = reference_forward_f32(x, *raw_params)
    assert jnp.allclose(out, ref_f32, atol=5e-2, rtol=5e-2), "mismatch vs f32 ref"

    print("KERNEL_OK")
</pallas_src>

<mosaic_0001>
module attributes {stable_mosaic.version = 11 : i64} {
  func.func @mlp_kernel(%arg0: i32, %arg1: memref<8x128xbf16, #tpu.memory_space<vmem>>, %arg2: memref<128x128xbf16, #tpu.memory_space<vmem>>, %arg3: memref<1x128xf32, #tpu.memory_space<vmem>>, %arg4: memref<128x128xbf16, #tpu.memory_space<vmem>>, %arg5: memref<1x128xf32, #tpu.memory_space<vmem>>, %arg6: memref<128x128xbf16, #tpu.memory_space<vmem>>, %arg7: memref<1x128xf32, #tpu.memory_space<vmem>>, %arg8: memref<8x128xf32, #tpu.memory_space<vmem>>) attributes {dimension_semantics = [#tpu.dimension_semantics<parallel>], iteration_bounds = array<i64: 2>, scalar_prefetch = 0 : i64, scratch_operands = 0 : i64, tpu.core_type = #tpu.core_type<tc>, window_params = [{transform_indices = @transform_0, window_bounds = array<i64: 8, 128>}, {pipeline_mode = #tpu.pipeline_mode<synchronous>, transform_indices = @transform_1, window_bounds = array<i64: 128, 128>}, {pipeline_mode = #tpu.pipeline_mode<synchronous>, transform_indices = @transform_2, window_bounds = array<i64: 1, 128>}, {pipeline_mode = #tpu.pipeline_mode<synchronous>, transform_indices = @transform_3, window_bounds = array<i64: 128, 128>}, {pipeline_mode = #tpu.pipeline_mode<synchronous>, transform_indices = @transform_4, window_bounds = array<i64: 1, 128>}, {pipeline_mode = #tpu.pipeline_mode<synchronous>, transform_indices = @transform_5, window_bounds = array<i64: 128, 128>}, {pipeline_mode = #tpu.pipeline_mode<synchronous>, transform_indices = @transform_6, window_bounds = array<i64: 1, 128>}, {transform_indices = @transform_7, window_bounds = array<i64: 8, 128>}]} {
    %c0 = arith.constant 0 : index
    %c0_0 = arith.constant 0 : index
    %0 = vector.load %arg1[%c0, %c0_0] : memref<8x128xbf16, #tpu.memory_space<vmem>>, vector<8x128xbf16>
    %c0_1 = arith.constant 0 : index
    %c0_2 = arith.constant 0 : index
    %1 = vector.load %arg2[%c0_1, %c0_2] : memref<128x128xbf16, #tpu.memory_space<vmem>>, vector<128x128xbf16>
    %cst = arith.constant dense<0.000000e+00> : vector<8x128xf32>
    %2 = tpu.matmul %0, %1, %cst {dimension_numbers = #tpu.dot_dimension_numbers<[1], [0], [0], [1], [0, 0, 1, 1], [], []>} : vector<8x128xbf16>, vector<128x128xbf16>, vector<8x128xf32> -> vector<8x128xf32>
    %c0_3 = arith.constant 0 : index
    %c0_4 = arith.constant 0 : index
    %3 = vector.load %arg3[%c0_3, %c0_4] : memref<1x128xf32, #tpu.memory_space<vmem>>, vector<1x128xf32>
    %4 = vector.broadcast %3 : vector<1x128xf32> to vector<8x128xf32>
    %5 = arith.addf %2, %4 : vector<8x128xf32>
    %cst_5 = arith.constant 0.000000e+00 : f32
    %6 = vector.broadcast %cst_5 : f32 to vector<8x128xf32>
    %7 = arith.maximumf %5, %6 : vector<8x128xf32>
    %8 = arith.truncf %7 : vector<8x128xf32> to vector<8x128xbf16>
    %c0_6 = arith.constant 0 : index
    %c0_7 = arith.constant 0 : index
    %9 = vector.load %arg4[%c0_6, %c0_7] : memref<128x128xbf16, #tpu.memory_space<vmem>>, vector<128x128xbf16>
    %cst_8 = arith.constant dense<0.000000e+00> : vector<8x128xf32>
    %10 = tpu.matmul %8, %9, %cst_8 {dimension_numbers = #tpu.dot_dimension_numbers<[1], [0], [0], [1], [0, 0, 1, 1], [], []>} : vector<8x128xbf16>, vector<128x128xbf16>, vector<8x128xf32> -> vector<8x128xf32>
    %c0_9 = arith.constant 0 : index
    %c0_10 = arith.constant 0 : index
    %11 = vector.load %arg5[%c0_9, %c0_10] : memref<1x128xf32, #tpu.memory_space<vmem>>, vector<1x128xf32>
    %12 = vector.broadcast %11 : vector<1x128xf32> to vector<8x128xf32>
    %13 = arith.addf %10, %12 : vector<8x128xf32>
    %cst_11 = arith.constant 0.000000e+00 : f32
    %14 = vector.broadcast %cst_11 : f32 to vector<8x128xf32>
    %15 = arith.maximumf %13, %14 : vector<8x128xf32>
    %16 = arith.truncf %15 : vector<8x128xf32> to vector<8x128xbf16>
    %c0_12 = arith.constant 0 : index
    %c0_13 = arith.constant 0 : index
    %17 = vector.load %arg6[%c0_12, %c0_13] : memref<128x128xbf16, #tpu.memory_space<vmem>>, vector<128x128xbf16>
    %cst_14 = arith.constant dense<0.000000e+00> : vector<8x128xf32>
    %18 = tpu.matmul %16, %17, %cst_14 {dimension_numbers = #tpu.dot_dimension_numbers<[1], [0], [0], [1], [0, 0, 1, 1], [], []>} : vector<8x128xbf16>, vector<128x128xbf16>, vector<8x128xf32> -> vector<8x128xf32>
    %c0_15 = arith.constant 0 : index
    %c0_16 = arith.constant 0 : index
    %19 = vector.load %arg7[%c0_15, %c0_16] : memref<1x128xf32, #tpu.memory_space<vmem>>, vector<1x128xf32>
    %20 = vector.broadcast %19 : vector<1x128xf32> to vector<8x128xf32>
    %21 = arith.addf %18, %20 : vector<8x128xf32>
    %c0_17 = arith.constant 0 : index
    %c0_18 = arith.constant 0 : index
    %22 = vector.load %arg8[%c0_17, %c0_18] : memref<8x128xf32, #tpu.memory_space<vmem>>, vector<8x128xf32>
    tpu.vector_store %arg8[%c0_17, %c0_18], %21 {strides = array<i32>} : memref<8x128xf32, #tpu.memory_space<vmem>>, vector<8x128xf32>,
    return
  }
  func.func @transform_0(%arg0: i32) -> (i32, i32) {
    %c0_i32 = arith.constant 0 : i32
    %c0_i32_0 = arith.constant 0 : i32
    return %arg0, %c0_i32 : i32, i32
  }
  func.func @transform_1(%arg0: i32) -> (i32, i32) {
    %c0_i32 = arith.constant 0 : i32
    %c0_i32_0 = arith.constant 0 : i32
    %c0_i32_1 = arith.constant 0 : i32
    return %c0_i32, %c0_i32_0 : i32, i32
  }
  func.func @transform_2(%arg0: i32) -> (i32, i32) {
    %c0_i32 = arith.constant 0 : i32
    %c0_i32_0 = arith.constant 0 : i32
    %c0_i32_1 = arith.constant 0 : i32
    return %c0_i32, %c0_i32_0 : i32, i32
  }
  func.func @transform_3(%arg0: i32) -> (i32, i32) {
    %c0_i32 = arith.constant 0 : i32
    %c0_i32_0 = arith.constant 0 : i32
    %c0_i32_1 = arith.constant 0 : i32
    return %c0_i32, %c0_i32_0 : i32, i32
  }
  func.func @transform_4(%arg0: i32) -> (i32, i32) {
    %c0_i32 = arith.constant 0 : i32
    %c0_i32_0 = arith.constant 0 : i32
    %c0_i32_1 = arith.constant 0 : i32
    return %c0_i32, %c0_i32_0 : i32, i32
  }
  func.func @transform_5(%arg0: i32) -> (i32, i32) {
    %c0_i32 = arith.constant 0 : i32
    %c0_i32_0 = arith.constant 0 : i32
    %c0_i32_1 = arith.constant 0 : i32
    return %c0_i32, %c0_i32_0 : i32, i32
  }
  func.func @transform_6(%arg0: i32) -> (i32, i32) {
    %c0_i32 = arith.constant 0 : i32
    %c0_i32_0 = arith.constant 0 : i32
    %c0_i32_1 = arith.constant 0 : i32
    return %c0_i32, %c0_i32_0 : i32, i32
  }
  func.func @transform_7(%arg0: i32) -> (i32, i32) {
    %c0_i32 = arith.constant 0 : i32
    %c0_i32_0 = arith.constant 0 : i32
    return %arg0, %c0_i32 : i32, i32
  }
}

</mosaic_0001>

<llo_original>
// kernel: _lambda_.1
$region0: #{_lambda_.1}
  #allocation0 [shape = 'u32[]', space=smem, size = 0x4, offset = 0x4, fixed_abs, tag = 'smem constant byte address 0x4 - core index']
  #allocation1 [shape = 'u32[72,128]{1,0:T(1,128)}', space=vmem, size = 0x9000, scoped, tag = 'internal scratch']
  %s0 = inlined_call_operand.vmem [shape: bf16[16,128], index: 0, kind: input, shape index: {}]
  %s1 = inlined_call_operand.hbm [shape: bf16[128,128], index: 1, kind: input, shape index: {}]
  %s2 = inlined_call_operand.vmem [shape: f32[1,128], index: 2, kind: input, shape index: {}]
  %s3 = inlined_call_operand.hbm [shape: bf16[128,128], index: 3, kind: input, shape index: {}]
  %s4 = inlined_call_operand.vmem [shape: f32[1,128], index: 4, kind: input, shape index: {}]
  %s5 = inlined_call_operand.hbm [shape: bf16[128,128], index: 5, kind: input, shape index: {}]
  %s6 = inlined_call_operand.vmem [shape: f32[1,128], index: 6, kind: input, shape index: {}]
  %s7 = inlined_call_operand.hbm [shape: f32[16,128], index: 7, kind: output, shape index: {}]
  %s8 = sld [smem:[#allocation0]]
  $region73: #{_lambda_.1} parent=0
    _
  %s10 = ssub.s32 1, %s8
  %s11 = scalar_select 0, %s10, %s8
  $region1: #{_lambda_.1} parent=0
    #allocation2 [shape = 'u8[32768]{0}', space=vmem, size = 0x8000, scoped, tag = 'input window, operand 1, single buffered']
    #allocation3 [shape = 's32[2]{0}', space=sflag, size = 0x8, scoped, tag = 'scoped memory for _lambda_.1']
    #allocation4 [shape = 's32[2]{0}', space=sflag, size = 0x8, scoped, tag = 'scoped memory for _lambda_.1']
    #allocation5 [shape = 'u8[32768]{0}', space=vmem, size = 0x8000, scoped, tag = 'input window, operand 3, single buffered']
    #allocation6 [shape = 's32[1]{0}', space=sflag, size = 0x4, scoped, tag = 'scoped memory for _lambda_.1']
    #allocation7 [shape = 'u8[32768]{0}', space=vmem, size = 0x8000, scoped, tag = 'input window, operand 5, single buffered']
    #allocation8 [shape = 'u8[8192]{0}', space=vmem, size = 0x2000, scoped, tag = 'output window, operand 0']
    %12 = vsyncpa [#allocation3], 0
    %13 = vsyncpa [#allocation6], 0
    %14 = vsyncpa [#allocation4], 0
    %s15 = scalar_lea.sflag [#allocation4], 1
    %16 = vsyncpa %s15, 0
    loop: start=0, step=1, limit=4
    $region2: #{_lambda_.1} parent=1 // loop_pre_header
      _
    $region3: #{_lambda_.1} parent=1 // loop_header
      %s18 = sphi 0, %s22
      %p19 = scmp.ge.s32.totalorder %s18, 4
      %s28 = sphi 0, %s30
      %s31 = sphi 0, %s28
      %s32 = sphi 0, %s31
      %s48 = sphi 0, %s32
      %s52 = sphi 0, %s52
      %s54 = sphi 0, %s52
      %s55 = sphi 0, %s54
      %s69 = sphi 0, %s55
      %s73 = sphi 0, %s73
      %s75 = sphi 0, %s73
      %s76 = sphi 0, %s75
      %s90 = sphi 0, %s76
      %s94 = sphi 0, %s94
      %s96 = sphi 0, %s94
      %s97 = sphi 0, %s96
      %s111 = sphi 0, %s97
      %s115 = sphi 0, %s115
      %s117 = sphi 0, %s115
      %s118 = sphi 0, %s117
      %s132 = sphi 0, %s118
      %s136 = sphi 0, %s136
      %s138 = sphi 0, %s136
      %s139 = sphi 0, %s138
      %s153 = sphi 0, %s139
      %s157 = sphi 0, %s157
      %s159 = sphi 0, %s157
      %s160 = sphi 0, %s159
      %s174 = sphi 0, %s160
      %s180 = sphi 0, %s182
      %s183 = sphi 0, %s180
      %s184 = sphi 0, %s183
      %s200 = sphi 0, %s184
    $region4: #{_lambda_.1} parent=1 // loop_header_branch
      %21 = sbr.rel (%p19) target = $region8
    $region5: #{_lambda_.1} parent=1 // loop_body
      %s23 = ssub.s32 %s18, 1
      %s24 = ssub.s32 %s18, 2
      %s25 = sadd.s32 %s18, 1
      %s26 = ssub.s32 %s18, %s25
      %p27 = scmp.eq.s32.totalorder %s26, 0
      %s29 = sadd.s32 %s28, 1
      %s30 = scalar_select %p27, %s28, %s29
      %p33 = pneg %p27
      %p34 = scmp.eq.s32.totalorder %s18, 1
      %p35 = por %p33, %p34
      %p36 = scmp.ne.s32.totalorder %s28, %s31
      %p37 = scmp.eq.s32.totalorder %s18, 0
      %p38 = por %p36, %p37
      %p39 = scmp.ne.s32.totalorder %s28, %s31
      %p40 = scmp.eq.s32.totalorder %s23, 1
      %p41 = por %p39, %p40
      %p42 = scmp.ne.s32.totalorder %s31, %s32
      %p43 = scmp.eq.s32.totalorder %s23, 0
      %p44 = por %p42, %p43
      %p45 = scmp.ne.s32.totalorder %s31, %s32
      %p46 = scmp.eq.s32.totalorder %s24, 1
      %p47 = por %p45, %p46
      %p49 = scmp.ne.s32.totalorder %s32, %s48
      %p50 = scmp.eq.s32.totalorder %s24, 0
      %p51 = por %p49, %p50
      %s53 = sadd.s32 %s52, 1
      %p56 = scmp.eq.s32.totalorder %s18, 1
      %p57 = scmp.ne.s32.totalorder %s52, %s54
      %p58 = scmp.eq.s32.totalorder %s18, 0
      %p59 = por %p57, %p58
      %p60 = scmp.ne.s32.totalorder %s52, %s54
      %p61 = scmp.eq.s32.totalorder %s23, 1
      %p62 = por %p60, %p61
      %p63 = scmp.ne.s32.totalorder %s54, %s55
      %p64 = scmp.eq.s32.totalorder %s23, 0
      %p65 = por %p63, %p64
      %p66 = scmp.ne.s32.totalorder %s54, %s55
      %p67 = scmp.eq.s32.totalorder %s24, 1
      %p68 = por %p66, %p67
      %p70 = scmp.ne.s32.totalorder %s55, %s69
      %p71 = scmp.eq.s32.totalorder %s24, 0
      %p72 = por %p70, %p71
      %s74 = sadd.s32 %s73, 1
      %p77 = scmp.eq.s32.totalorder %s18, 1
      %p78 = scmp.ne.s32.totalorder %s73, %s75
      %p79 = scmp.eq.s32.totalorder %s18, 0
      %p80 = por %p78, %p79
      %p81 = scmp.ne.s32.totalorder %s73, %s75
      %p82 = scmp.eq.s32.totalorder %s23, 1
      %p83 = por %p81, %p82
      %p84 = scmp.ne.s32.totalorder %s75, %s76
      %p85 = scmp.eq.s32.totalorder %s23, 0
      %p86 = por %p84, %p85
      %p87 = scmp.ne.s32.totalorder %s75, %s76
      %p88 = scmp.eq.s32.totalorder %s24, 1
      %p89 = por %p87, %p88
      %p91 = scmp.ne.s32.totalorder %s76, %s90
      %p92 = scmp.eq.s32.totalorder %s24, 0
      %p93 = por %p91, %p92
      %s95 = sadd.s32 %s94, 1
      %p98 = scmp.eq.s32.totalorder %s18, 1
      %p99 = scmp.ne.s32.totalorder %s94, %s96
      %p100 = scmp.eq.s32.totalorder %s18, 0
      %p101 = por %p99, %p100
      %p102 = scmp.ne.s32.totalorder %s94, %s96
      %p103 = scmp.eq.s32.totalorder %s23, 1
      %p104 = por %p102, %p103
      %p105 = scmp.ne.s32.totalorder %s96, %s97
      %p106 = scmp.eq.s32.totalorder %s23, 0
      %p107 = por %p105, %p106
      %p108 = scmp.ne.s32.totalorder %s96, %s97
      %p109 = scmp.eq.s32.totalorder %s24, 1
      %p110 = por %p108, %p109
      %p112 = scmp.ne.s32.totalorder %s97, %s111
      %p113 = scmp.eq.s32.totalorder %s24, 0
      %p114 = por %p112, %p113
      %s116 = sadd.s32 %s115, 1
      %p119 = scmp.eq.s32.totalorder %s18, 1
      %p120 = scmp.ne.s32.totalorder %s115, %s117
      %p121 = scmp.eq.s32.totalorder %s18, 0
      %p122 = por %p120, %p121
      %p123 = scmp.ne.s32.totalorder %s115, %s117
      %p124 = scmp.eq.s32.totalorder %s23, 1
      %p125 = por %p123, %p124
      %p126 = scmp.ne.s32.totalorder %s117, %s118
      %p127 = scmp.eq.s32.totalorder %s23, 0
      %p128 = por %p126, %p127
      %p129 = scmp.ne.s32.totalorder %s117, %s118
      %p130 = scmp.eq.s32.totalorder %s24, 1
      %p131 = por %p129, %p130
      %p133 = scmp.ne.s32.totalorder %s118, %s132
      %p134 = scmp.eq.s32.totalorder %s24, 0
      %p135 = por %p133, %p134
      %s137 = sadd.s32 %s136, 1
      %p140 = scmp.eq.s32.totalorder %s18, 1
      %p141 = scmp.ne.s32.totalorder %s136, %s138
      %p142 = scmp.eq.s32.totalorder %s18, 0
      %p143 = por %p141, %p142
      %p144 = scmp.ne.s32.totalorder %s136, %s138
      %p145 = scmp.eq.s32.totalorder %s23, 1
      %p146 = por %p144, %p145
      %p147 = scmp.ne.s32.totalorder %s138, %s139
      %p148 = scmp.eq.s32.totalorder %s23, 0
      %p149 = por %p147, %p148
      %p150 = scmp.ne.s32.totalorder %s138, %s139
      %p151 = scmp.eq.s32.totalorder %s24, 1
      %p152 = por %p150, %p151
      %p154 = scmp.ne.s32.totalorder %s139, %s153
      %p155 = scmp.eq.s32.totalorder %s24, 0
      %p156 = por %p154, %p155
      %s158 = sadd.s32 %s157, 1
      %p161 = scmp.eq.s32.totalorder %s18, 1
      %p162 = scmp.ne.s32.totalorder %s157, %s159
      %p163 = scmp.eq.s32.totalorder %s18, 0
      %p164 = por %p162, %p163
      %p165 = scmp.ne.s32.totalorder %s157, %s159
      %p166 = scmp.eq.s32.totalorder %s23, 1
      %p167 = por %p165, %p166
      %p168 = scmp.ne.s32.totalorder %s159, %s160
      %p169 = scmp.eq.s32.totalorder %s23, 0
      %p170 = por %p168, %p169
      %p171 = scmp.ne.s32.totalorder %s159, %s160
      %p172 = scmp.eq.s32.totalorder %s24, 1
      %p173 = por %p171, %p172
      %p175 = scmp.ne.s32.totalorder %s160, %s174
      %p176 = scmp.eq.s32.totalorder %s24, 0
      %p177 = por %p175, %p176
      %s178 = ssub.s32 %s18, %s25
      %p179 = scmp.eq.s32.totalorder %s178, 0
      %s181 = sadd.s32 %s180, 1
      %s182 = scalar_select %p179, %s180, %s181
      %p185 = pneg %p179
      %p186 = scmp.eq.s32.totalorder %s18, 1
      %p187 = por %p185, %p186
      %p188 = scmp.ne.s32.totalorder %s180, %s183
      %p189 = scmp.eq.s32.totalorder %s18, 0
      %p190 = por %p188, %p189
      %p191 = scmp.ne.s32.totalorder %s180, %s183
      %p192 = scmp.eq.s32.totalorder %s23, 1
      %p193 = por %p191, %p192
      %p194 = scmp.ne.s32.totalorder %s183, %s184
      %p195 = scmp.eq.s32.totalorder %s23, 0
      %p196 = por %p194, %p195
      %p197 = scmp.ne.s32.totalorder %s183, %s184
      %p198 = scmp.eq.s32.totalorder %s24, 1
      %p199 = por %p197, %p198
      %p201 = scmp.ne.s32.totalorder %s184, %s200
      %p202 = scmp.eq.s32.totalorder %s24, 0
      %p203 = por %p201, %p202
      %p204 = scmp.le.s32.totalorder 1, %s18
      %p205 = scmp.lt.s32.totalorder %s18, 3
      %p206 = pnand %p204, %p205
      %p207 = pneg %p206
      // Predicated region
      $region9: #{_lambda_.1} parent=5 // pred_check
        _
      $region10: #{_lambda_.1} parent=5 // pred_check_branch
        %209 = sbr.rel (%p206) target = $region12
      $region11: #{_lambda_.1} parent=5 // pred_region
        %s210 = ssub.s32 %s18, 1
        // Predicated region
        $region13: #{_lambda_.1} parent=11 // pred_check
          %p211 = pneg %p65
        $region14: #{_lambda_.1} parent=11 // pred_check_branch
          %213 = sbr.rel (%p211) target = $region16
        $region15: #{_lambda_.1} parent=11 // pred_region
          %215 = vsyncadd [#allocation3], 0
          %s216 = sshll.u32 %s1, 4
          %s217 = int_to_ptr.hbm [resolvable:$true] %s216
          %s218 = sshll.u32 [#allocation2], 4
          %s219 = int_to_ptr.vmem [resolvable:$true] %s218
          %224 = dma.hbm_to_vmem [thread:$0]  %s217, 1024, %s219, [#allocation3], 64, 64, 4
        $region16: #{_lambda_.1} parent=11 // pred_fallthru
          _
        // Predicated region
        $region17: #{_lambda_.1} parent=11 // pred_check
          %p225 = pneg %p86
        $region18: #{_lambda_.1} parent=11 // pred_check_branch
          %227 = sbr.rel (%p225) target = $region20
        $region19: #{_lambda_.1} parent=11 // pred_region
          _
        $region20: #{_lambda_.1} parent=11 // pred_fallthru
          _
        // Predicated region
        $region21: #{_lambda_.1} parent=11 // pred_check
          %p228 = pneg %p107
        $region22: #{_lambda_.1} parent=11 // pred_check_branch
          %230 = sbr.rel (%p228) target = $region24
        $region23: #{_lambda_.1} parent=11 // pred_region
          %232 = vsyncadd [#allocation6], 0
          %s233 = sshll.u32 %s3, 4
          %s234 = int_to_ptr.hbm [resolvable:$true] %s233
          %s235 = sshll.u32 [#allocation5], 4
          %s236 = int_to_ptr.vmem [resolvable:$true] %s235
          %241 = dma.hbm_to_vmem [thread:$0]  %s234, 1024, %s236, [#allocation6], 64, 64, 4
        $region24: #{_lambda_.1} parent=11 // pred_fallthru
          _
        // Predicated region
        $region25: #{_lambda_.1} parent=11 // pred_check
          %p242 = pneg %p128
        $region26: #{_lambda_.1} parent=11 // pred_check_branch
          %244 = sbr.rel (%p242) target = $region28
        $region27: #{_lambda_.1} parent=11 // pred_region
          _
        $region28: #{_lambda_.1} parent=11 // pred_fallthru
          _
        // Predicated region
        $region29: #{_lambda_.1} parent=11 // pred_check
          %p245 = pneg %p149
        $region30: #{_lambda_.1} parent=11 // pred_check_branch
          %247 = sbr.rel (%p245) target = $region32
        $region31: #{_lambda_.1} parent=11 // pred_region
          %249 = vsyncadd [#allocation6], 0
          %s250 = sshll.u32 %s5, 4
          %s251 = int_to_ptr.hbm [resolvable:$true] %s250
          %s252 = sshll.u32 [#allocation7], 4
          %s253 = int_to_ptr.vmem [resolvable:$true] %s252
          %258 = dma.hbm_to_vmem [thread:$0]  %s251, 1024, %s253, [#allocation6], 64, 64, 4
        $region32: #{_lambda_.1} parent=11 // pred_fallthru
          _
        // Predicated region
        $region33: #{_lambda_.1} parent=11 // pred_check
          %p259 = pneg %p170
        $region34: #{_lambda_.1} parent=11 // pred_check_branch
          %261 = sbr.rel (%p259) target = $region36
        $region35: #{_lambda_.1} parent=11 // pred_region
          _
        $region36: #{_lambda_.1} parent=11 // pred_fallthru
          _
      $region12: #{_lambda_.1} parent=5 // pred_fallthru
        _
      %p262 = scmp.lt.s32.totalorder %s18, 2
      // Predicated region
      $region37: #{_lambda_.1} parent=5 // pred_check
        %p263 = pneg %p262
      $region38: #{_lambda_.1} parent=5 // pred_check_branch
        %265 = sbr.rel (%p263) target = $region40
      $region39: #{_lambda_.1} parent=5 // pred_region
        // Predicated region
        $region41: #{_lambda_.1} parent=39 // pred_check
          %p266 = pneg %p38
        $region42: #{_lambda_.1} parent=39 // pred_check_branch
          %268 = sbr.rel (%p266) target = $region44
        $region43: #{_lambda_.1} parent=39 // pred_region
          %p269 = scmp.lt.s32.totalorder %s18, 1
          %s270 = scalar_select %p269, %s18, 1
          %s271 = smul.addr %s270, 4
          %s272 = scalar_lea.vmem %s0, %s271
        $region44: #{_lambda_.1} parent=39 // pred_fallthru
          _
      $region40: #{_lambda_.1} parent=5 // pred_fallthru
        _
      %p273 = scmp.le.s32.totalorder 1, %s18
      %p274 = scmp.lt.s32.totalorder %s18, 3
      %p275 = pnand %p273, %p274
      %p276 = pneg %p275
      // Predicated region
      $region45: #{_lambda_.1} parent=5 // pred_check
        _
      $region46: #{_lambda_.1} parent=5 // pred_check_branch
        %278 = sbr.rel (%p275) target = $region48
      $region47: #{_lambda_.1} parent=5 // pred_region
        %s279 = ssub.s32 %s18, 1
        // Predicated region
        $region49: #{_lambda_.1} parent=47 // pred_check
          %p280 = pneg %p65
        $region50: #{_lambda_.1} parent=47 // pred_check_branch
          %282 = sbr.rel (%p280) target = $region52
        $region51: #{_lambda_.1} parent=47 // pred_region
          %284 = dma.done [#allocation3], 1024
        $region52: #{_lambda_.1} parent=47 // pred_fallthru
          _
        // Predicated region
        $region53: #{_lambda_.1} parent=47 // pred_check
          %p285 = pneg %p107
        $region54: #{_lambda_.1} parent=47 // pred_check_branch
          %287 = sbr.rel (%p285) target = $region56
        $region55: #{_lambda_.1} parent=47 // pred_region
          %289 = dma.done [#allocation6], 1024
        $region56: #{_lambda_.1} parent=47 // pred_fallthru
          _
        // Predicated region
        $region57: #{_lambda_.1} parent=47 // pred_check
          %p290 = pneg %p149
        $region58: #{_lambda_.1} parent=47 // pred_check_branch
          %292 = sbr.rel (%p290) target = $region60
        $region59: #{_lambda_.1} parent=47 // pred_region
          %294 = dma.done [#allocation6], 1024
        $region60: #{_lambda_.1} parent=47 // pred_fallthru
          _
        %p295 = scmp.lt.s32.totalorder %s23, 1
        %s296 = scalar_select %p295, %s23, 1
        %s297 = smul.addr %s296, 4
        %s298 = scalar_lea.vmem %s0, %s297
        %p299 = pneg %p44
        %p300 = pneg %p41
        %p301 = pneg %p65
        %p302 = pneg %p62
        %p303 = pneg %p86
        %p304 = pneg %p83
        %p305 = pneg %p107
        %p306 = pneg %p104
        %p307 = pneg %p128
        %p308 = pneg %p125
        %p309 = pneg %p149
        %p310 = pneg %p146
        %p311 = pneg %p170
        %p312 = pneg %p167
        %p313 = pneg %p196
        %p314 = pneg %p193
        %s315 = sand.u32 %s183, 1
        %s316 = scalar_lea.sflag [#allocation4], %s315
        %s317 = sand.u32 %s183, 1
        %s318 = smul.addr %s317, 8
        %s319 = scalar_lea.vmem [#allocation8], %s318
        %p320 = scmp.lt.s32.totalorder %s23, 1
        %s321 = scalar_select %p320, %s23, 1
        %s322 = smul.addr %s321, 4
        %s323 = scalar_lea.vmem %s0, %s322
        %v324 = vld [vmem:[%s323] sm:$0xf]
        %v325 = vld [vmem:[#allocation2] sm:$0xf]
        %v326 = vld [vmem:[#allocation2 + $0x4] sm:$0xf]
        %v327 = vld [vmem:[#allocation2 + $0x8] sm:$0xf]
        %v328 = vld [vmem:[#allocation2 + $0xc] sm:$0xf]
        %v329 = vld [vmem:[#allocation2 + $0x10] sm:$0xf]
        %v330 = vld [vmem:[#allocation2 + $0x14] sm:$0xf]
        %v331 = vld [vmem:[#allocation2 + $0x18] sm:$0xf]
        %v332 = vld [vmem:[#allocation2 + $0x1c] sm:$0xf]
        %v333 = vld [vmem:[#allocation2 + $0x20] sm:$0xf]
        %v334 = vld [vmem:[#allocation2 + $0x24] sm:$0xf]
        %v335 = vld [vmem:[#allocation2 + $0x28] sm:$0xf]
        %v336 = vld [vmem:[#allocation2 + $0x2c] sm:$0xf]
        %v337 = vld [vmem:[#allocation2 + $0x30] sm:$0xf]
        %v338 = vld [vmem:[#allocation2 + $0x34] sm:$0xf]
        %v339 = vld [vmem:[#allocation2 + $0x38] sm:$0xf]
        %v340 = vld [vmem:[#allocation2 + $0x3c] sm:$0xf]
        %v341 = vld [vmem:[%s2] sm:$0x1]
        %v343 = vperm.slane %v341, 0
        %v361 = vunpack.c.l.b16 %v325
        %v362 = vunpack.c.l.b16 %v326
        %v363 = vunpack.c.l.b16 %v327
        %v364 = vunpack.c.l.b16 %v328
        %v365 = vunpack.c.l.b16 %v329
        %v366 = vunpack.c.l.b16 %v330
        %v367 = vunpack.c.l.b16 %v331
        %v368 = vunpack.c.l.b16 %v332
        %v369 = vunpack.c.l.b16 %v333
        %v370 = vunpack.c.l.b16 %v334
        %v371 = vunpack.c.l.b16 %v335
        %v372 = vunpack.c.l.b16 %v336
        %v373 = vunpack.c.l.b16 %v337
        %v374 = vunpack.c.l.b16 %v338
        %v375 = vunpack.c.l.b16 %v339
        %v376 = vunpack.c.l.b16 %v340
        %v377 = vpack.c.b16 %v362, %v361
        %v378 = vpack.c.b16 %v364, %v363
        %v379 = vpack.c.b16 %v366, %v365
        %v380 = vpack.c.b16 %v368, %v367
        %v381 = vpack.c.b16 %v370, %v369
        %v382 = vpack.c.b16 %v372, %v371
        %v383 = vpack.c.b16 %v374, %v373
        %v384 = vpack.c.b16 %v376, %v375
        %393 = vmatpush.bf16.msra.mxu0 %v384
        %394 = vmatpush.bf16.msra.mxu0 %v383
        %395 = vmatpush.bf16.msra.mxu0 %v382
        %396 = vmatpush.bf16.msra.mxu0 %v381
        %397 = vmatpush.bf16.msra.mxu0 %v380
        %398 = vmatpush.bf16.msra.mxu0 %v379
        %399 = vmatpush.bf16.msra.mxu0 %v378
        %400 = vmatpush.bf16.msra.mxu0 %v377
        %401 = vmatmul.bf16.gmra.mxu0 %v324
        %v402 = vpop.f32.mrf.mxu0
        %v403 = vadd.f32 %v343, %v402
        %v404 = vpop.f32.mrf.mxu0
        %405 = vdwg.mxu0
        %v406 = vmax.f32 %v403, 0.0
        %v407 = vpack.c.bf16 %v406, %v406
        %v408 = vld [vmem:[#allocation5] sm:$0xf]
        %v409 = vld [vmem:[#allocation5 + $0x4] sm:$0xf]
        %v410 = vld [vmem:[#allocation5 + $0x8] sm:$0xf]
        %v411 = vld [vmem:[#allocation5 + $0xc] sm:$0xf]
        %v412 = vld [vmem:[#allocation5 + $0x10] sm:$0xf]
        %v413 = vld [vmem:[#allocation5 + $0x14] sm:$0xf]
        %v414 = vld [vmem:[#allocation5 + $0x18] sm:$0xf]
        %v415 = vld [vmem:[#allocation5 + $0x1c] sm:$0xf]
        %v416 = vld [vmem:[#allocation5 + $0x20] sm:$0xf]
        %v417 = vld [vmem:[#allocation5 + $0x24] sm:$0xf]
        %v418 = vld [vmem:[#allocation5 + $0x28] sm:$0xf]
        %v419 = vld [vmem:[#allocation5 + $0x2c] sm:$0xf]
        %v420 = vld [vmem:[#allocation5 + $0x30] sm:$0xf]
        %v421 = vld [vmem:[#allocation5 + $0x34] sm:$0xf]
        %v422 = vld [vmem:[#allocation5 + $0x38] sm:$0xf]
        %v423 = vld [vmem:[#allocation5 + $0x3c] sm:$0xf]
        %v424 = vld [vmem:[%s4] sm:$0x1]
        %v426 = vperm.slane %v424, 0
        %v444 = vunpack.c.l.b16 %v408
        %v445 = vunpack.c.l.b16 %v409
        %v446 = vunpack.c.l.b16 %v410
        %v447 = vunpack.c.l.b16 %v411
        %v448 = vunpack.c.l.b16 %v412
        %v449 = vunpack.c.l.b16 %v413
        %v450 = vunpack.c.l.b16 %v414
        %v451 = vunpack.c.l.b16 %v415
        %v452 = vunpack.c.l.b16 %v416
        %v453 = vunpack.c.l.b16 %v417
        %v454 = vunpack.c.l.b16 %v418
        %v455 = vunpack.c.l.b16 %v419
        %v456 = vunpack.c.l.b16 %v420
        %v457 = vunpack.c.l.b16 %v421
        %v458 = vunpack.c.l.b16 %v422
        %v459 = vunpack.c.l.b16 %v423
        %v460 = vpack.c.b16 %v445, %v444
        %v461 = vpack.c.b16 %v447, %v446
        %v462 = vpack.c.b16 %v449, %v448
        %v463 = vpack.c.b16 %v451, %v450
        %v464 = vpack.c.b16 %v453, %v452
        %v465 = vpack.c.b16 %v455, %v454
        %v466 = vpack.c.b16 %v457, %v456
        %v467 = vpack.c.b16 %v459, %v458
        %476 = vmatpush.bf16.msra.mxu0 %v467
        %477 = vmatpush.bf16.msra.mxu0 %v466
        %478 = vmatpush.bf16.msra.mxu0 %v465
        %479 = vmatpush.bf16.msra.mxu0 %v464
        %480 = vmatpush.bf16.msra.mxu0 %v463
        %481 = vmatpush.bf16.msra.mxu0 %v462
        %482 = vmatpush.bf16.msra.mxu0 %v461
        %483 = vmatpush.bf16.msra.mxu0 %v460
        %484 = vmatmul.bf16.gmra.mxu0 %v407
        %v485 = vpop.f32.mrf.mxu0
        %v486 = vadd.f32 %v426, %v485
        %v487 = vpop.f32.mrf.mxu0
        %488 = vdwg.mxu0
        %v489 = vmax.f32 %v486, 0.0
        %v490 = vpack.c.bf16 %v489, %v489
        %v491 = vld [vmem:[#allocation7] sm:$0xf]
        %v492 = vld [vmem:[#allocation7 + $0x4] sm:$0xf]
        %v493 = vld [vmem:[#allocation7 + $0x8] sm:$0xf]
        %v494 = vld [vmem:[#allocation7 + $0xc] sm:$0xf]
        %v495 = vld [vmem:[#allocation7 + $0x10] sm:$0xf]
        %v496 = vld [vmem:[#allocation7 + $0x14] sm:$0xf]
        %v497 = vld [vmem:[#allocation7 + $0x18] sm:$0xf]
        %v498 = vld [vmem:[#allocation7 + $0x1c] sm:$0xf]
        %v499 = vld [vmem:[#allocation7 + $0x20] sm:$0xf]
        %v500 = vld [vmem:[#allocation7 + $0x24] sm:$0xf]
        %v501 = vld [vmem:[#allocation7 + $0x28] sm:$0xf]
        %v502 = vld [vmem:[#allocation7 + $0x2c] sm:$0xf]
        %v503 = vld [vmem:[#allocation7 + $0x30] sm:$0xf]
        %v504 = vld [vmem:[#allocation7 + $0x34] sm:$0xf]
        %v505 = vld [vmem:[#allocation7 + $0x38] sm:$0xf]
        %v506 = vld [vmem:[#allocation7 + $0x3c] sm:$0xf]
        %v507 = vld [vmem:[%s6] sm:$0x1]
        %v509 = vperm.slane %v507, 0
        %v527 = vunpack.c.l.b16 %v491
        %v528 = vunpack.c.l.b16 %v492
        %v529 = vunpack.c.l.b16 %v493
        %v530 = vunpack.c.l.b16 %v494
        %v531 = vunpack.c.l.b16 %v495
        %v532 = vunpack.c.l.b16 %v496
        %v533 = vunpack.c.l.b16 %v497
        %v534 = vunpack.c.l.b16 %v498
        %v535 = vunpack.c.l.b16 %v499
        %v536 = vunpack.c.l.b16 %v500
        %v537 = vunpack.c.l.b16 %v501
        %v538 = vunpack.c.l.b16 %v502
        %v539 = vunpack.c.l.b16 %v503
        %v540 = vunpack.c.l.b16 %v504
        %v541 = vunpack.c.l.b16 %v505
        %v542 = vunpack.c.l.b16 %v506
        %v543 = vpack.c.b16 %v528, %v527
        %v544 = vpack.c.b16 %v530, %v529
        %v545 = vpack.c.b16 %v532, %v531
        %v546 = vpack.c.b16 %v534, %v533
        %v547 = vpack.c.b16 %v536, %v535
        %v548 = vpack.c.b16 %v538, %v537
        %v549 = vpack.c.b16 %v540, %v539
        %v550 = vpack.c.b16 %v542, %v541
        %559 = vmatpush.bf16.msra.mxu0 %v550
        %560 = vmatpush.bf16.msra.mxu0 %v549
        %561 = vmatpush.bf16.msra.mxu0 %v548
        %562 = vmatpush.bf16.msra.mxu0 %v547
        %563 = vmatpush.bf16.msra.mxu0 %v546
        %564 = vmatpush.bf16.msra.mxu0 %v545
        %565 = vmatpush.bf16.msra.mxu0 %v544
        %566 = vmatpush.bf16.msra.mxu0 %v543
        %567 = vmatmul.bf16.gmra.mxu0 %v490
        %v568 = vpop.f32.mrf.mxu0
        %v569 = vadd.f32 %v509, %v568
        %v570 = vpop.f32.mrf.mxu0
        %571 = vdwg.mxu0
        %572 = vst [vmem:[%s319] sm:$0xff] %v569
        %s573 = sand.u32 %s183, 1
        %s574 = scalar_lea.sflag [#allocation4], %s573
        %s575 = sand.u32 %s183, 1
        %s576 = smul.addr %s575, 8
        %s577 = scalar_lea.vmem [#allocation8], %s576
        // Predicated region
        $region61: #{_lambda_.1} parent=47 // pred_check
          %p578 = pneg %p193
        $region62: #{_lambda_.1} parent=47 // pred_check_branch
          %580 = sbr.rel (%p578) target = $region64
        $region63: #{_lambda_.1} parent=47 // pred_region
          %582 = vsyncadd %s574, 0
          %s583 = smul.addr %s23, 8
          %s584 = scalar_lea.hbm %s7, %s583
          %s586 = sshll.u32 %s577, 4
          %s587 = int_to_ptr.vmem [resolvable:$true] %s586
          %s588 = sshll.u32 %s584, 4
          %s589 = int_to_ptr.hbm [resolvable:$true] %s588
          %591 = dma.vmem_to_hbm [thread:$0]  %s587, 128, %s589, %s574
        $region64: #{_lambda_.1} parent=47 // pred_fallthru
          _
      $region48: #{_lambda_.1} parent=5 // pred_fallthru
        _
      %p592 = scmp.le.s32.totalorder 2, %s18
      // Predicated region
      $region65: #{_lambda_.1} parent=5 // pred_check
        %p593 = pneg %p592
      $region66: #{_lambda_.1} parent=5 // pred_check_branch
        %595 = sbr.rel (%p593) target = $region68
      $region67: #{_lambda_.1} parent=5 // pred_region
        %s596 = ssub.s32 %s18, 2
        // Predicated region
        $region69: #{_lambda_.1} parent=67 // pred_check
          %p597 = pneg %p199
        $region70: #{_lambda_.1} parent=67 // pred_check_branch
          %599 = sbr.rel (%p597) target = $region72
        $region71: #{_lambda_.1} parent=67 // pred_region
          %s600 = sand.u32 %s184, 1
          %s601 = scalar_lea.sflag [#allocation4], %s600
          %s602 = sand.u32 %s184, 1
          %s603 = smul.addr %s602, 8
          %s604 = scalar_lea.vmem [#allocation8], %s603
          %606 = dma.done %s601, 128
        $region72: #{_lambda_.1} parent=67 // pred_fallthru
          _
      $region68: #{_lambda_.1} parent=5 // pred_fallthru
        _
    $region6: #{_lambda_.1} parent=1 // loop_footer
      %s22 = sadd.s32 1, %s18
    $region7: #{_lambda_.1} parent=1 // loop_footer_branch
      %17 = sbr.rel target = $region3
    $region8: #{_lambda_.1} parent=1 // loop_exit
      _
    %607 = vsyncpa [#allocation3], 1
    %s608 = scalar_lea.sflag [#allocation3], 1
    %609 = vsyncpa %s608, 1
    %610 = vsyncpa [#allocation6], 1
    %611 = vsyncpa [#allocation4], 1
    %s612 = scalar_lea.sflag [#allocation4], 1
    %613 = vsyncpa %s612, 1

</llo_original>
